<compile_context>
chip_gen: v5e
topology: v5e:2x2
jax: 0.10.0
libtpu: 0.0.40
codegen_flags: <defaults>
</compile_context>

<pallas_src>
import jax
import jax.numpy as jnp
from jax import lax
from jax.experimental import pallas as pl
from jax.experimental.pallas import tpu as pltpu

EPS = 1e-5  # nn.InstanceNorm2d default


def _round_up(v, m):
    return ((v + m - 1) // m) * m


def _choose_tile(hw, c, l, vmem_budget_bytes=12 * 1024 * 1024, max_tile=2048):
    # Rough per-lane f32 footprint: double-buffered x/seg/out tiles + the [6C, T]
    # matmul result + elementwise temps. Conservative so it fits v7x's smaller VMEM.
    bytes_per_lane = 4 * (2 * (2 * c + l) + 10 * c)
    t = min(max_tile, max(128, vmem_budget_bytes // bytes_per_lane))
    t = max(128, (t // 128) * 128)
    return min(t, _round_up(hw, 128))


def _inade_kernel(x_ref, seg_ref, rhs_ref, mean_ref, rstd_ref, o_ref):
    # x_ref:    (1, C, T)
    # seg_ref:  (1, L, T)
    # rhs_ref:  (1, 6C, L)   rows: [w0^T | nf0^T | b0^T | w1^T | nf1^T | b1^T]
    # mean_ref: (1, C, 1), rstd_ref: (1, C, 1)   per-sample InstanceNorm stats
    # o_ref:    (1, C, T)
    x = x_ref[0].astype(jnp.float32)      # [C, T]
    seg = seg_ref[0].astype(jnp.float32)  # [L, T]
    rhs = rhs_ref[0].astype(jnp.float32)  # [6C, L]

    C = x.shape[0]

    # One wide, lane-dense MXU matmul replaces the six tiny seg contractions.
    m = jnp.dot(rhs, seg, preferred_element_type=jnp.float32)  # [6C, T]

    cw0 = m[0 * C:1 * C]
    in0 = m[1 * C:2 * C]
    cb0 = m[2 * C:3 * C]
    cw1 = m[3 * C:4 * C]
    in1 = m[4 * C:5 * C]
    cb1 = m[5 * C:6 * C]

    gamma = cw0 * in0 + cb0               # [C, T]
    beta = cw1 * in1 + cb1                # [C, T]

    mean = mean_ref[0]                    # [C, 1], broadcast along lanes
    rstd = rstd_ref[0]                    # [C, 1]

    # Fold InstanceNorm into the modulation: gamma*(x-mean)*rstd + beta.
    scale = gamma * rstd
    shift = beta - scale * mean
    o_ref[0] = (scale * x + shift).astype(o_ref.dtype)


def inade_modulation(x, segmentation_map, noise, params):
    """x: [N,C,H,W], segmentation_map: [N,L,Hs,Ws], noise: [N,L,2,D] (PyTorch layout)."""
    N, C, H, W = x.shape
    _, L, Hs, Ws = segmentation_map.shape
    HW = H * W

    # F.interpolate(..., mode='nearest') applied to seg only (x / out are never
    # transposed or copied in HBM — just reshaped).
    # TODO(synk): fuse this gather into the kernel via scalar-prefetched row/col
    # index arrays so seg is read at its source resolution.
    hi = (jnp.arange(H) * Hs) // H
    wi = (jnp.arange(W) * Ws) // W
    seg_l = segmentation_map[:, :, hi, :][:, :, :, wi].reshape(N, L, HW)

    x_l = x.reshape(N, C, HW)  # free reshape, channels-first layout kept

    # InstanceNorm2d stats (biased variance), per (n, c): tiny wrapper reduction.
    xf = x_l.astype(jnp.float32)
    mean = jnp.mean(xf, axis=2, keepdims=True)            # [N, C, 1]
    var = jnp.var(xf, axis=2, keepdims=True)              # biased, matches InstanceNorm2d
    rstd = lax.rsqrt(var + EPS)                           # [N, C, 1]

    # fc_noise hoisted out of the kernel: one batched matmul over all N samples.
    nf = jnp.einsum('nlkd,cd->nlkc', noise, params["fc_w"]) + params["fc_b"]   # [N,L,2,C]

    # Per-sample wide RHS [N, 6C, L]: rows [w0^T | nf0^T | b0^T | w1^T | nf1^T | b1^T]
    w, b = params["weight"], params["bias"]               # [L, C, 2]
    w0t = jnp.broadcast_to(w[..., 0].T, (N, C, L))
    b0t = jnp.broadcast_to(b[..., 0].T, (N, C, L))
    w1t = jnp.broadcast_to(w[..., 1].T, (N, C, L))
    b1t = jnp.broadcast_to(b[..., 1].T, (N, C, L))
    nf0t = jnp.transpose(nf[:, :, 0, :], (0, 2, 1))       # [N, C, L]
    nf1t = jnp.transpose(nf[:, :, 1, :], (0, 2, 1))
    rhs = jnp.concatenate([w0t, nf0t, b0t, w1t, nf1t, b1t], axis=1).astype(jnp.float32)

    # HW tiling along the lane axis.
    TILE = _choose_tile(HW, C, L)
    HW_pad = _round_up(HW, TILE)
    if HW_pad != HW:
        pad = HW_pad - HW
        x_l = jnp.pad(x_l, ((0, 0), (0, 0), (0, pad)))
        seg_l = jnp.pad(seg_l, ((0, 0), (0, 0), (0, pad)))
    n_tiles = HW_pad // TILE
    C6 = 6 * C

    out_l = pl.pallas_call(
        _inade_kernel,
        out_shape=jax.ShapeDtypeStruct((N, C, HW_pad), x.dtype),
        grid_spec=pltpu.PrefetchScalarGridSpec(
            num_scalar_prefetch=0,
            grid=(N, n_tiles),
            in_specs=[
                pl.BlockSpec((1, C, TILE), lambda n, t: (n, 0, t)),   # x
                pl.BlockSpec((1, L, TILE), lambda n, t: (n, 0, t)),   # seg
                pl.BlockSpec((1, C6, L), lambda n, t: (n, 0, 0)),     # wide per-sample RHS
                pl.BlockSpec((1, C, 1), lambda n, t: (n, 0, 0)),      # mean
                pl.BlockSpec((1, C, 1), lambda n, t: (n, 0, 0)),      # rstd
            ],
            out_specs=pl.BlockSpec((1, C, TILE), lambda n, t: (n, 0, t)),
        ),
        compiler_params=pltpu.CompilerParams(
            dimension_semantics=("parallel", "parallel"),
            vmem_limit_bytes=32 * 1024 * 1024,
        ),
    )(x_l, seg_l, rhs, mean, rstd)

    return out_l[:, :, :HW].reshape(N, C, H, W)


def inade_modulation_ref(x, segmentation_map, noise, params):
    """Pure-JAX reference mirroring the PyTorch forward."""
    N, C, H, W = x.shape
    _, L, Hs, Ws = segmentation_map.shape
    # InstanceNorm2d
    mean = jnp.mean(x, axis=(2, 3), keepdims=True)
    var = jnp.var(x, axis=(2, 3), keepdims=True)
    x_n = (x - mean) / jnp.sqrt(var + EPS)
    # nearest resize
    hi = (jnp.arange(H) * Hs) // H
    wi = (jnp.arange(W) * Ws) // W
    seg = segmentation_map[:, :, hi, :][:, :, :, wi]
    # fc_noise
    nf = jnp.einsum('nlkd,cd->nlkc', noise, params["fc_w"]) + params["fc_b"]
    w, b = params["weight"], params["bias"]
    outs = []
    for k in range(2):
        cw = jnp.einsum('ic,nihw->nchw', w[..., k], seg)
        cb = jnp.einsum('ic,nihw->nchw', b[..., k], seg)
        inoise = jnp.einsum('nic,nihw->nchw', nf[:, :, k, :], seg)
        outs.append(cw * inoise + cb)
    gamma, beta = outs
    return gamma * x_n + beta


if __name__ == "__main__":
    key = jax.random.PRNGKey(0)
    N, C, H, W = 2, 8, 16, 16        # batch, feature_map_dim, spatial
    L = 6                            # num_labels
    D = 32                           # noise_dim
    Hs, Ws = 32, 32                  # raw segmentation-map spatial size

    keys = jax.random.split(key, 6)
    x = jax.random.normal(keys[0], (N, C, H, W), dtype=jnp.float32)
    # one-hot segmentation map (nearest-resized inside the wrapper)
    labels = jax.random.randint(keys[1], (N, Hs, Ws), 0, L)
    seg = jnp.transpose(jax.nn.one_hot(labels, L, dtype=jnp.float32), (0, 3, 1, 2))
    noise = jax.random.normal(keys[2], (N, L, 2, D), dtype=jnp.float32)

    # Deterministic parameter init matching the module's __init__ shapes:
    #   weight ~ U[0,1)  [L, C, 2], bias = 0 [L, C, 2],
    #   fc_noise = Linear(D, C): weight [C, D], bias [C] ~ U(-1/sqrt(D), 1/sqrt(D))
    bound = 1.0 / (D ** 0.5)
    params = {
        "weight": jax.random.uniform(keys[3], (L, C, 2), dtype=jnp.float32),
        "bias": jnp.zeros((L, C, 2), dtype=jnp.float32),
        "fc_w": jax.random.uniform(keys[4], (C, D), minval=-bound, maxval=bound,
                                   dtype=jnp.float32),
        "fc_b": jax.random.uniform(keys[5], (C,), minval=-bound, maxval=bound,
                                   dtype=jnp.float32),
    }

    out = inade_modulation(x, seg, noise, params)
    out = jax.block_until_ready(out)

    ref = jax.block_until_ready(inade_modulation_ref(x, seg, noise, params))
    assert out.shape == (N, C, H, W)
    assert jnp.allclose(out, ref, atol=1e-4, rtol=1e-4), \
        f"max abs err = {jnp.max(jnp.abs(out - ref))}"

    print("KERNEL_OK")
</pallas_src>

<mosaic_0001>
module attributes {stable_mosaic.version = 11 : i64} {
  func.func @_inade_kernel(%arg0: i32, %arg1: i32, %arg2: memref<1x8x256xf32, #tpu.memory_space<vmem>>, %arg3: memref<1x6x256xf32, #tpu.memory_space<vmem>>, %arg4: memref<1x48x6xf32, #tpu.memory_space<vmem>>, %arg5: memref<1x8x1xf32, #tpu.memory_space<vmem>>, %arg6: memref<1x8x1xf32, #tpu.memory_space<vmem>>, %arg7: memref<1x8x256xf32, #tpu.memory_space<vmem>>) attributes {dimension_semantics = [#tpu.dimension_semantics<parallel>, #tpu.dimension_semantics<parallel>], iteration_bounds = array<i64: 2, 1>, scalar_prefetch = 0 : i64, scratch_operands = 0 : i64, tpu.core_type = #tpu.core_type<tc>, window_params = [{transform_indices = @transform_0, window_bounds = array<i64: 1, 8, 256>}, {transform_indices = @transform_1, window_bounds = array<i64: 1, 6, 256>}, {transform_indices = @transform_2, window_bounds = array<i64: 1, 48, 6>}, {transform_indices = @transform_3, window_bounds = array<i64: 1, 8, 1>}, {transform_indices = @transform_4, window_bounds = array<i64: 1, 8, 1>}, {transform_indices = @transform_5, window_bounds = array<i64: 1, 8, 256>}]} {
    %c0 = arith.constant 0 : index
    %c0_0 = arith.constant 0 : index
    %c0_1 = arith.constant 0 : index
    %0 = vector.load %arg2[%c0, %c0_0, %c0_1] : memref<1x8x256xf32, #tpu.memory_space<vmem>>, vector<1x8x256xf32>
    %1 = vector.shape_cast %0 : vector<1x8x256xf32> to vector<8x256xf32>
    %c0_2 = arith.constant 0 : index
    %c0_3 = arith.constant 0 : index
    %c0_4 = arith.constant 0 : index
    %2 = vector.load %arg3[%c0_2, %c0_3, %c0_4] : memref<1x6x256xf32, #tpu.memory_space<vmem>>, vector<1x6x256xf32>
    %3 = vector.shape_cast %2 : vector<1x6x256xf32> to vector<6x256xf32>
    %c0_5 = arith.constant 0 : index
    %c0_6 = arith.constant 0 : index
    %c0_7 = arith.constant 0 : index
    %4 = vector.load %arg4[%c0_5, %c0_6, %c0_7] : memref<1x48x6xf32, #tpu.memory_space<vmem>>, vector<1x48x6xf32>
    %5 = vector.shape_cast %4 : vector<1x48x6xf32> to vector<48x6xf32>
    %cst = arith.constant dense<0.000000e+00> : vector<48x256xf32>
    %6 = tpu.matmul %5, %3, %cst {dimension_numbers = #tpu.dot_dimension_numbers<[1], [0], [0], [1], [0, 0, 1, 1], [], []>} : vector<48x6xf32>, vector<6x256xf32>, vector<48x256xf32> -> vector<48x256xf32>
    %7 = vector.extract_strided_slice %6 {offsets = [0, 0], sizes = [8, 256], strides = [1, 1]} : vector<48x256xf32> to vector<8x256xf32>
    %8 = vector.extract_strided_slice %6 {offsets = [8, 0], sizes = [8, 256], strides = [1, 1]} : vector<48x256xf32> to vector<8x256xf32>
    %9 = vector.extract_strided_slice %6 {offsets = [16, 0], sizes = [8, 256], strides = [1, 1]} : vector<48x256xf32> to vector<8x256xf32>
    %10 = vector.extract_strided_slice %6 {offsets = [24, 0], sizes = [8, 256], strides = [1, 1]} : vector<48x256xf32> to vector<8x256xf32>
    %11 = vector.extract_strided_slice %6 {offsets = [32, 0], sizes = [8, 256], strides = [1, 1]} : vector<48x256xf32> to vector<8x256xf32>
    %12 = vector.extract_strided_slice %6 {offsets = [40, 0], sizes = [8, 256], strides = [1, 1]} : vector<48x256xf32> to vector<8x256xf32>
    %13 = arith.mulf %7, %8 : vector<8x256xf32>
    %14 = arith.addf %13, %9 : vector<8x256xf32>
    %15 = arith.mulf %10, %11 : vector<8x256xf32>
    %16 = arith.addf %15, %12 : vector<8x256xf32>
    %c0_8 = arith.constant 0 : index
    %c0_9 = arith.constant 0 : index
    %c0_10 = arith.constant 0 : index
    %17 = vector.load %arg5[%c0_8, %c0_9, %c0_10] : memref<1x8x1xf32, #tpu.memory_space<vmem>>, vector<1x8x1xf32>
    %18 = vector.shape_cast %17 : vector<1x8x1xf32> to vector<8x1xf32>
    %c0_11 = arith.constant 0 : index
    %c0_12 = arith.constant 0 : index
    %c0_13 = arith.constant 0 : index
    %19 = vector.load %arg6[%c0_11, %c0_12, %c0_13] : memref<1x8x1xf32, #tpu.memory_space<vmem>>, vector<1x8x1xf32>
    %20 = vector.shape_cast %19 : vector<1x8x1xf32> to vector<8x1xf32>
    %21 = vector.broadcast %20 : vector<8x1xf32> to vector<8x256xf32>
    %22 = arith.mulf %14, %21 : vector<8x256xf32>
    %23 = vector.broadcast %18 : vector<8x1xf32> to vector<8x256xf32>
    %24 = arith.mulf %22, %23 : vector<8x256xf32>
    %25 = arith.subf %16, %24 : vector<8x256xf32>
    %26 = arith.mulf %22, %1 : vector<8x256xf32>
    %27 = arith.addf %26, %25 : vector<8x256xf32>
    %c0_14 = arith.constant 0 : index
    %c0_15 = arith.constant 0 : index
    %c0_16 = arith.constant 0 : index
    %28 = vector.load %arg7[%c0_14, %c0_15, %c0_16] : memref<1x8x256xf32, #tpu.memory_space<vmem>>, vector<1x8x256xf32>
    %29 = vector.shape_cast %28 : vector<1x8x256xf32> to vector<8x256xf32>
    %30 = vector.shape_cast %27 : vector<8x256xf32> to vector<1x8x256xf32>
    tpu.vector_store %arg7[%c0_14, %c0_15, %c0_16], %30 {strides = array<i32>} : memref<1x8x256xf32, #tpu.memory_space<vmem>>, vector<1x8x256xf32>,
    return
  }
  func.func @transform_0(%arg0: i32, %arg1: i32) -> (i32, i32, i32) {
    %c0_i32 = arith.constant 0 : i32
    %c0_i32_0 = arith.constant 0 : i32
    return %arg0, %c0_i32, %arg1 : i32, i32, i32
  }
  func.func @transform_1(%arg0: i32, %arg1: i32) -> (i32, i32, i32) {
    %c0_i32 = arith.constant 0 : i32
    %c0_i32_0 = arith.constant 0 : i32
    return %arg0, %c0_i32, %arg1 : i32, i32, i32
  }
  func.func @transform_2(%arg0: i32, %arg1: i32) -> (i32, i32, i32) {
    %c0_i32 = arith.constant 0 : i32
    %c0_i32_0 = arith.constant 0 : i32
    %c0_i32_1 = arith.constant 0 : i32
    return %arg0, %c0_i32, %c0_i32_0 : i32, i32, i32
  }
  func.func @transform_3(%arg0: i32, %arg1: i32) -> (i32, i32, i32) {
    %c0_i32 = arith.constant 0 : i32
    %c0_i32_0 = arith.constant 0 : i32
    %c0_i32_1 = arith.constant 0 : i32
    return %arg0, %c0_i32, %c0_i32_0 : i32, i32, i32
  }
  func.func @transform_4(%arg0: i32, %arg1: i32) -> (i32, i32, i32) {
    %c0_i32 = arith.constant 0 : i32
    %c0_i32_0 = arith.constant 0 : i32
    %c0_i32_1 = arith.constant 0 : i32
    return %arg0, %c0_i32, %c0_i32_0 : i32, i32, i32
  }
  func.func @transform_5(%arg0: i32, %arg1: i32) -> (i32, i32, i32) {
    %c0_i32 = arith.constant 0 : i32
    %c0_i32_0 = arith.constant 0 : i32
    return %arg0, %c0_i32, %arg1 : i32, i32, i32
  }
}

</mosaic_0001>

<llo_original>
// kernel: tpu_custom_call.1
$region0: #{tpu_custom_call.1}
  #allocation0 [shape = 'u32[]', space=smem, size = 0x4, offset = 0x4, fixed_abs, tag = 'smem constant byte address 0x4 - core index']
  #allocation1 [shape = 'u32[72,128]{1,0:T(1,128)}', space=vmem, size = 0x9000, scoped, tag = 'internal scratch']
  %s0 = inlined_call_operand.vmem [shape: f32[2,8,256], index: 0, kind: input, shape index: {}]
  %s1 = inlined_call_operand.vmem [shape: f32[2,6,256], index: 1, kind: input, shape index: {}]
  %s2 = inlined_call_operand.vmem [shape: f32[2,48,6], index: 2, kind: input, shape index: {}]
  %s3 = inlined_call_operand.vmem [shape: f32[2,8,1], index: 3, kind: input, shape index: {}]
  %s4 = inlined_call_operand.vmem [shape: f32[2,8,1], index: 4, kind: input, shape index: {}]
  %s5 = inlined_call_operand.hbm [shape: f32[2,8,256], index: 5, kind: output, shape index: {}]
  %s6 = sld [smem:[#allocation0]]
  $region53: #{tpu_custom_call.1} parent=0
    _
  %s8 = ssub.s32 1, %s6
  %s9 = scalar_select 0, %s8, %s6
  $region1: #{tpu_custom_call.1} parent=0
    #allocation2 [shape = 'u8[16384]{0}', space=vmem, size = 0x4000, scoped, tag = 'output window, operand 0']
    #allocation3 [shape = 's32[2]{0}', space=sflag, size = 0x8, scoped, tag = 'scoped memory for tpu_custom_call.1']
    %10 = vsyncpa [#allocation3], 0
    %s11 = scalar_lea.sflag [#allocation3], 1
    %12 = vsyncpa %s11, 0
    loop: start=0, step=1, limit=4
    $region2: #{tpu_custom_call.1} parent=1 // loop_pre_header
      _
    $region3: #{tpu_custom_call.1} parent=1 // loop_header
      %s14 = sphi 0, %s18
      %p15 = scmp.ge.s32.totalorder %s14, 4
      %s21 = sphi 0, %s33
      %s22 = sphi 0, %s29
      %s23 = sphi 0, %s21
      %s24 = sphi 0, %s22
      %s25 = sphi 0, %s23
      %s26 = sphi 0, %s24
      %s38 = sphi 0, %s40
      %s41 = sphi 0, %s38
      %s42 = sphi 0, %s41
      %s58 = sphi 0, %s42
      %s66 = sphi 0, %s68
      %s69 = sphi 0, %s66
      %s70 = sphi 0, %s69
      %s86 = sphi 0, %s70
      %s92 = sphi 0, %s94
      %s95 = sphi 0, %s92
      %s96 = sphi 0, %s95
      %s112 = sphi 0, %s96
      %s118 = sphi 0, %s120
      %s121 = sphi 0, %s118
      %s122 = sphi 0, %s121
      %s138 = sphi 0, %s122
      %s144 = sphi 0, %s146
      %s147 = sphi 0, %s144
      %s148 = sphi 0, %s147
      %s164 = sphi 0, %s148
      %s172 = sphi 0, %s174
      %s175 = sphi 0, %s172
      %s176 = sphi 0, %s175
      %s192 = sphi 0, %s176
    $region4: #{tpu_custom_call.1} parent=1 // loop_header_branch
      %17 = sbr.rel (%p15) target = $region8
    $region5: #{tpu_custom_call.1} parent=1 // loop_body
      %s19 = ssub.s32 %s14, 1
      %s20 = ssub.s32 %s14, 2
      %s27 = sadd.s32 1, %s22
      %p28 = scmp.ge.s32.totalorder %s27, 1
      %s29 = scalar_select %p28, 0, %s27
      %s30 = sadd.s32 1, %s21
      %s31 = scalar_select %p28, %s30, %s21
      %p32 = scmp.ge.s32.totalorder %s31, 2
      %s33 = scalar_select %p32, 0, %s31
      %s34 = ssub.s32 %s21, %s33
      %s35 = ssub.s32 %s22, %s29
      %s36 = sor.u32 %s34, %s35
      %p37 = scmp.eq.s32.totalorder %s36, 0
      %s39 = sadd.s32 %s38, 1
      %s40 = scalar_select %p37, %s38, %s39
      %p43 = pneg %p37
      %p44 = scmp.eq.s32.totalorder %s14, 1
      %p45 = por %p43, %p44
      %p46 = scmp.ne.s32.totalorder %s38, %s41
      %p47 = scmp.eq.s32.totalorder %s14, 0
      %p48 = por %p46, %p47
      %p49 = scmp.ne.s32.totalorder %s38, %s41
      %p50 = scmp.eq.s32.totalorder %s19, 1
      %p51 = por %p49, %p50
      %p52 = scmp.ne.s32.totalorder %s41, %s42
      %p53 = scmp.eq.s32.totalorder %s19, 0
      %p54 = por %p52, %p53
      %p55 = scmp.ne.s32.totalorder %s41, %s42
      %p56 = scmp.eq.s32.totalorder %s20, 1
      %p57 = por %p55, %p56
      %p59 = scmp.ne.s32.totalorder %s42, %s58
      %p60 = scmp.eq.s32.totalorder %s20, 0
      %p61 = por %p59, %p60
      %s62 = ssub.s32 %s21, %s33
      %s63 = ssub.s32 %s22, %s29
      %s64 = sor.u32 %s62, %s63
      %p65 = scmp.eq.s32.totalorder %s64, 0
      %s67 = sadd.s32 %s66, 1
      %s68 = scalar_select %p65, %s66, %s67
      %p71 = pneg %p65
      %p72 = scmp.eq.s32.totalorder %s14, 1
      %p73 = por %p71, %p72
      %p74 = scmp.ne.s32.totalorder %s66, %s69
      %p75 = scmp.eq.s32.totalorder %s14, 0
      %p76 = por %p74, %p75
      %p77 = scmp.ne.s32.totalorder %s66, %s69
      %p78 = scmp.eq.s32.totalorder %s19, 1
      %p79 = por %p77, %p78
      %p80 = scmp.ne.s32.totalorder %s69, %s70
      %p81 = scmp.eq.s32.totalorder %s19, 0
      %p82 = por %p80, %p81
      %p83 = scmp.ne.s32.totalorder %s69, %s70
      %p84 = scmp.eq.s32.totalorder %s20, 1
      %p85 = por %p83, %p84
      %p87 = scmp.ne.s32.totalorder %s70, %s86
      %p88 = scmp.eq.s32.totalorder %s20, 0
      %p89 = por %p87, %p88
      %s90 = ssub.s32 %s21, %s33
      %p91 = scmp.eq.s32.totalorder %s90, 0
      %s93 = sadd.s32 %s92, 1
      %s94 = scalar_select %p91, %s92, %s93
      %p97 = pneg %p91
      %p98 = scmp.eq.s32.totalorder %s14, 1
      %p99 = por %p97, %p98
      %p100 = scmp.ne.s32.totalorder %s92, %s95
      %p101 = scmp.eq.s32.totalorder %s14, 0
      %p102 = por %p100, %p101
      %p103 = scmp.ne.s32.totalorder %s92, %s95
      %p104 = scmp.eq.s32.totalorder %s19, 1
      %p105 = por %p103, %p104
      %p106 = scmp.ne.s32.totalorder %s95, %s96
      %p107 = scmp.eq.s32.totalorder %s19, 0
      %p108 = por %p106, %p107
      %p109 = scmp.ne.s32.totalorder %s95, %s96
      %p110 = scmp.eq.s32.totalorder %s20, 1
      %p111 = por %p109, %p110
      %p113 = scmp.ne.s32.totalorder %s96, %s112
      %p114 = scmp.eq.s32.totalorder %s20, 0
      %p115 = por %p113, %p114
      %s116 = ssub.s32 %s21, %s33
      %p117 = scmp.eq.s32.totalorder %s116, 0
      %s119 = sadd.s32 %s118, 1
      %s120 = scalar_select %p117, %s118, %s119
      %p123 = pneg %p117
      %p124 = scmp.eq.s32.totalorder %s14, 1
      %p125 = por %p123, %p124
      %p126 = scmp.ne.s32.totalorder %s118, %s121
      %p127 = scmp.eq.s32.totalorder %s14, 0
      %p128 = por %p126, %p127
      %p129 = scmp.ne.s32.totalorder %s118, %s121
      %p130 = scmp.eq.s32.totalorder %s19, 1
      %p131 = por %p129, %p130
      %p132 = scmp.ne.s32.totalorder %s121, %s122
      %p133 = scmp.eq.s32.totalorder %s19, 0
      %p134 = por %p132, %p133
      %p135 = scmp.ne.s32.totalorder %s121, %s122
      %p136 = scmp.eq.s32.totalorder %s20, 1
      %p137 = por %p135, %p136
      %p139 = scmp.ne.s32.totalorder %s122, %s138
      %p140 = scmp.eq.s32.totalorder %s20, 0
      %p141 = por %p139, %p140
      %s142 = ssub.s32 %s21, %s33
      %p143 = scmp.eq.s32.totalorder %s142, 0
      %s145 = sadd.s32 %s144, 1
      %s146 = scalar_select %p143, %s144, %s145
      %p149 = pneg %p143
      %p150 = scmp.eq.s32.totalorder %s14, 1
      %p151 = por %p149, %p150
      %p152 = scmp.ne.s32.totalorder %s144, %s147
      %p153 = scmp.eq.s32.totalorder %s14, 0
      %p154 = por %p152, %p153
      %p155 = scmp.ne.s32.totalorder %s144, %s147
      %p156 = scmp.eq.s32.totalorder %s19, 1
      %p157 = por %p155, %p156
      %p158 = scmp.ne.s32.totalorder %s147, %s148
      %p159 = scmp.eq.s32.totalorder %s19, 0
      %p160 = por %p158, %p159
      %p161 = scmp.ne.s32.totalorder %s147, %s148
      %p162 = scmp.eq.s32.totalorder %s20, 1
      %p163 = por %p161, %p162
      %p165 = scmp.ne.s32.totalorder %s148, %s164
      %p166 = scmp.eq.s32.totalorder %s20, 0
      %p167 = por %p165, %p166
      %s168 = ssub.s32 %s21, %s33
      %s169 = ssub.s32 %s22, %s29
      %s170 = sor.u32 %s168, %s169
      %p171 = scmp.eq.s32.totalorder %s170, 0
      %s173 = sadd.s32 %s172, 1
      %s174 = scalar_select %p171, %s172, %s173
      %p177 = pneg %p171
      %p178 = scmp.eq.s32.totalorder %s14, 1
      %p179 = por %p177, %p178
      %p180 = scmp.ne.s32.totalorder %s172, %s175
      %p181 = scmp.eq.s32.totalorder %s14, 0
      %p182 = por %p180, %p181
      %p183 = scmp.ne.s32.totalorder %s172, %s175
      %p184 = scmp.eq.s32.totalorder %s19, 1
      %p185 = por %p183, %p184
      %p186 = scmp.ne.s32.totalorder %s175, %s176
      %p187 = scmp.eq.s32.totalorder %s19, 0
      %p188 = por %p186, %p187
      %p189 = scmp.ne.s32.totalorder %s175, %s176
      %p190 = scmp.eq.s32.totalorder %s20, 1
      %p191 = por %p189, %p190
      %p193 = scmp.ne.s32.totalorder %s176, %s192
      %p194 = scmp.eq.s32.totalorder %s20, 0
      %p195 = por %p193, %p194
      %p196 = scmp.le.s32.totalorder 1, %s14
      %p197 = scmp.lt.s32.totalorder %s14, 3
      %p198 = pnand %p196, %p197
      %p199 = pneg %p198
      // Predicated region
      $region9: #{tpu_custom_call.1} parent=5 // pred_check
        _
      $region10: #{tpu_custom_call.1} parent=5 // pred_check_branch
        %201 = sbr.rel (%p198) target = $region12
      $region11: #{tpu_custom_call.1} parent=5 // pred_region
        %s202 = ssub.s32 %s14, 1
      $region12: #{tpu_custom_call.1} parent=5 // pred_fallthru
        _
      %p203 = scmp.lt.s32.totalorder %s14, 2
      // Predicated region
      $region13: #{tpu_custom_call.1} parent=5 // pred_check
        %p204 = pneg %p203
      $region14: #{tpu_custom_call.1} parent=5 // pred_check_branch
        %206 = sbr.rel (%p204) target = $region16
      $region15: #{tpu_custom_call.1} parent=5 // pred_region
        // Predicated region
        $region17: #{tpu_custom_call.1} parent=15 // pred_check
          %p207 = pneg %p48
        $region18: #{tpu_custom_call.1} parent=15 // pred_check_branch
          %209 = sbr.rel (%p207) target = $region20
        $region19: #{tpu_custom_call.1} parent=15 // pred_region
          %s210 = smul.u32 2, %s22
          %p211 = scmp.lt.s32.totalorder %s21, 1
          %s212 = scalar_select %p211, %s21, 1
          %p213 = scmp.lt.s32.totalorder %s210, 1
          %s214 = scalar_select %p213, %s210, 1
          %s215 = smul.addr %s212, 2
          %s216 = sadd.s32 %s214, %s215
          %s217 = smul.addr %s216, 8
          %s218 = scalar_lea.vmem %s0, %s217
          %s219 = smul.u32 2, %s22
        $region20: #{tpu_custom_call.1} parent=15 // pred_fallthru
          _
        // Predicated region
        $region21: #{tpu_custom_call.1} parent=15 // pred_check
          %p220 = pneg %p76
        $region22: #{tpu_custom_call.1} parent=15 // pred_check_branch
          %222 = sbr.rel (%p220) target = $region24
        $region23: #{tpu_custom_call.1} parent=15 // pred_region
          %s223 = smul.u32 2, %s22
          %p224 = scmp.lt.s32.totalorder %s21, 1
          %s225 = scalar_select %p224, %s21, 1
          %p226 = scmp.lt.s32.totalorder %s223, 1
          %s227 = scalar_select %p226, %s223, 1
          %s228 = smul.addr %s225, 2
          %s229 = sadd.s32 %s227, %s228
          %s230 = smul.addr %s229, 8
          %s231 = scalar_lea.vmem %s1, %s230
          %s232 = smul.u32 2, %s22
        $region24: #{tpu_custom_call.1} parent=15 // pred_fallthru
          _
        // Predicated region
        $region25: #{tpu_custom_call.1} parent=15 // pred_check
          %p233 = pneg %p102
        $region26: #{tpu_custom_call.1} parent=15 // pred_check_branch
          %235 = sbr.rel (%p233) target = $region28
        $region27: #{tpu_custom_call.1} parent=15 // pred_region
          %p236 = scmp.lt.s32.totalorder %s21, 1
          %s237 = scalar_select %p236, %s21, 1
          %s238 = smul.addr %s237, 6
          %s239 = smul.addr %s238, 8
          %s240 = scalar_lea.vmem %s2, %s239
        $region28: #{tpu_custom_call.1} parent=15 // pred_fallthru
          _
        // Predicated region
        $region29: #{tpu_custom_call.1} parent=15 // pred_check
          %p241 = pneg %p128
        $region30: #{tpu_custom_call.1} parent=15 // pred_check_branch
          %243 = sbr.rel (%p241) target = $region32
        $region31: #{tpu_custom_call.1} parent=15 // pred_region
          %p244 = scmp.lt.s32.totalorder %s21, 1
          %s245 = scalar_select %p244, %s21, 1
          %s246 = smul.addr %s245, 8
          %s247 = scalar_lea.vmem %s3, %s246
        $region32: #{tpu_custom_call.1} parent=15 // pred_fallthru
          _
        // Predicated region
        $region33: #{tpu_custom_call.1} parent=15 // pred_check
          %p248 = pneg %p154
        $region34: #{tpu_custom_call.1} parent=15 // pred_check_branch
          %250 = sbr.rel (%p248) target = $region36
        $region35: #{tpu_custom_call.1} parent=15 // pred_region
          %p251 = scmp.lt.s32.totalorder %s21, 1
          %s252 = scalar_select %p251, %s21, 1
          %s253 = smul.addr %s252, 8
          %s254 = scalar_lea.vmem %s4, %s253
        $region36: #{tpu_custom_call.1} parent=15 // pred_fallthru
          _
      $region16: #{tpu_custom_call.1} parent=5 // pred_fallthru
        _
      %p255 = scmp.le.s32.totalorder 1, %s14
      %p256 = scmp.lt.s32.totalorder %s14, 3
      %p257 = pnand %p255, %p256
      %p258 = pneg %p257
      // Predicated region
      $region37: #{tpu_custom_call.1} parent=5 // pred_check
        _
      $region38: #{tpu_custom_call.1} parent=5 // pred_check_branch
        %260 = sbr.rel (%p257) target = $region40
      $region39: #{tpu_custom_call.1} parent=5 // pred_region
        %s261 = ssub.s32 %s14, 1
        %s262 = smul.u32 2, %s24
        %p263 = scmp.lt.s32.totalorder %s23, 1
        %s264 = scalar_select %p263, %s23, 1
        %p265 = scmp.lt.s32.totalorder %s262, 1
        %s266 = scalar_select %p265, %s262, 1
        %s267 = smul.addr %s264, 2
        %s268 = sadd.s32 %s266, %s267
        %s269 = smul.addr %s268, 8
        %s270 = scalar_lea.vmem %s0, %s269
        %p271 = pneg %p54
        %p272 = pneg %p51
        %s273 = smul.u32 2, %s24
        %p274 = scmp.lt.s32.totalorder %s23, 1
        %s275 = scalar_select %p274, %s23, 1
        %p276 = scmp.lt.s32.totalorder %s273, 1
        %s277 = scalar_select %p276, %s273, 1
        %s278 = smul.addr %s275, 2
        %s279 = sadd.s32 %s277, %s278
        %s280 = smul.addr %s279, 8
        %s281 = scalar_lea.vmem %s1, %s280
        %p282 = pneg %p82
        %p283 = pneg %p79
        %p284 = scmp.lt.s32.totalorder %s23, 1
        %s285 = scalar_select %p284, %s23, 1
        %s286 = smul.addr %s285, 6
        %s287 = smul.addr %s286, 8
        %s288 = scalar_lea.vmem %s2, %s287
        %p289 = pneg %p108
        %p290 = pneg %p105
        %p291 = scmp.lt.s32.totalorder %s23, 1
        %s292 = scalar_select %p291, %s23, 1
        %s293 = smul.addr %s292, 8
        %s294 = scalar_lea.vmem %s3, %s293
        %p295 = pneg %p134
        %p296 = pneg %p131
        %p297 = scmp.lt.s32.totalorder %s23, 1
        %s298 = scalar_select %p297, %s23, 1
        %s299 = smul.addr %s298, 8
        %s300 = scalar_lea.vmem %s4, %s299
        %p301 = pneg %p160
        %p302 = pneg %p157
        %p303 = pneg %p188
        %p304 = pneg %p185
        %s305 = sand.u32 %s175, 1
        %s306 = scalar_lea.sflag [#allocation3], %s305
        %s307 = sand.u32 %s175, 1
        %s308 = smul.addr %s307, 16
        %s309 = scalar_lea.vmem [#allocation2], %s308
        %s310 = smul.u32 2, %s24
        %p311 = scmp.lt.s32.totalorder %s23, 1
        %s312 = scalar_select %p311, %s23, 1
        %p313 = scmp.lt.s32.totalorder %s310, 1
        %s314 = scalar_select %p313, %s310, 1
        %s315 = smul.addr %s312, 2
        %s316 = sadd.s32 %s314, %s315
        %s317 = smul.addr %s316, 8
        %s318 = scalar_lea.vmem %s0, %s317
        %s319 = smul.u32 2, %s24
        %s320 = smul.u32 2, %s24
        %p321 = scmp.lt.s32.totalorder %s23, 1
        %s322 = scalar_select %p321, %s23, 1
        %p323 = scmp.lt.s32.totalorder %s320, 1
        %s324 = scalar_select %p323, %s320, 1
        %s325 = smul.addr %s322, 2
        %s326 = sadd.s32 %s324, %s325
        %s327 = smul.addr %s326, 8
        %s328 = scalar_lea.vmem %s1, %s327
        %s329 = smul.u32 2, %s24
        %p330 = scmp.lt.s32.totalorder %s23, 1
        %s331 = scalar_select %p330, %s23, 1
        %s332 = smul.addr %s331, 6
        %s333 = smul.addr %s332, 8
        %s334 = scalar_lea.vmem %s2, %s333
        %p335 = scmp.lt.s32.totalorder %s23, 1
        %s336 = scalar_select %p335, %s23, 1
        %s337 = smul.addr %s336, 8
        %s338 = scalar_lea.vmem %s3, %s337
        %p339 = scmp.lt.s32.totalorder %s23, 1
        %s340 = scalar_select %p339, %s23, 1
        %s341 = smul.addr %s340, 8
        %s342 = scalar_lea.vmem %s4, %s341
        %s343 = smul.u32 2, %s24
        %v344 = vld [vmem:[%s318] sm:$0xff]
        %v345 = vld [vmem:[%s318 + $0x8] sm:$0xff]
        %v346 = vld [vmem:[%s328] sm:$0x3f]
        %v347 = vld [vmem:[%s328 + $0x8] sm:$0x3f]
        %v348 = vld [vmem:[%s334] sm:$0xff]
        %v349 = vld [vmem:[%s334 + $0x8] sm:$0xff]
        %v350 = vld [vmem:[%s334 + $0x10] sm:$0xff]
        %v351 = vld [vmem:[%s334 + $0x18] sm:$0xff]
        %v352 = vld [vmem:[%s334 + $0x20] sm:$0xff]
        %v353 = vld [vmem:[%s334 + $0x28] sm:$0xff]
        %vm354 = vcmask 48128
        %v356 = vsel %vm354, %v348, 0
        %v359 = vsel %vm354, %v349, 0
        %v362 = vsel %vm354, %v350, 0
        %v365 = vsel %vm354, %v351, 0
        %v368 = vsel %vm354, %v352, 0
        %v371 = vsel %vm354, %v353, 0
        %vm373 = vcmask 1045504
        %v375 = vsel %vm373, %v346, 0
        %v378 = vsel %vm373, %v347, 0
        %380 = vmatpush.msra.mxu0 0.0
        %381 = vmatpush.msra.mxu0 0.0
        %382 = vmatpush.msra.mxu0 0.0
        %383 = vmatpush.msra.mxu0 0.0
        %384 = vmatpush.msra.mxu0 0.0
        %385 = vmatpush.msra.mxu0 0.0
        %386 = vmatpush.msra.mxu0 0.0
        %387 = vmatpush.msra.mxu0 0.0
        %388 = vmatpush.msra.mxu0 0.0
        %389 = vmatpush.msra.mxu0 0.0
        %390 = vmatpush.msra.mxu0 0.0
        %391 = vmatpush.msra.mxu0 0.0
        %392 = vmatpush.msra.mxu0 0.0
        %393 = vmatpush.msra.mxu0 0.0
        %394 = vmatpush.msra.mxu0 0.0
        %395 = vmatpush.msra.mxu0 %v375
        %396 = vmatmul.f32.gmra.mxu0 %v356
        %v397 = vpop.f32.mrf.mxu0
        %v398 = vadd.f32 0.0, %v397
        %399 = vmatmul.f32.gmra.mxu0 %v359
        %v400 = vpop.f32.mrf.mxu0
        %v401 = vadd.f32 0.0, %v400
        %402 = vmatmul.f32.gmra.mxu0 %v362
        %v403 = vpop.f32.mrf.mxu0
        %v404 = vadd.f32 0.0, %v403
        %405 = vmatmul.f32.gmra.mxu0 %v365
        %v406 = vpop.f32.mrf.mxu0
        %v407 = vadd.f32 0.0, %v406
        %408 = vmatmul.f32.gmra.mxu0 %v368
        %v409 = vpop.f32.mrf.mxu0
        %v410 = vadd.f32 0.0, %v409
        %411 = vmatmul.f32.gmra.mxu0 %v371
        %v412 = vpop.f32.mrf.mxu0
        %v413 = vadd.f32 0.0, %v412
        %414 = vdwg.mxu0
        %415 = vmatpush.msra.mxu0 0.0
        %416 = vmatpush.msra.mxu0 0.0
        %417 = vmatpush.msra.mxu0 0.0
        %418 = vmatpush.msra.mxu0 0.0
        %419 = vmatpush.msra.mxu0 0.0
        %420 = vmatpush.msra.mxu0 0.0
        %421 = vmatpush.msra.mxu0 0.0
        %422 = vmatpush.msra.mxu0 0.0
        %423 = vmatpush.msra.mxu0 0.0
        %424 = vmatpush.msra.mxu0 0.0
        %425 = vmatpush.msra.mxu0 0.0
        %426 = vmatpush.msra.mxu0 0.0
        %427 = vmatpush.msra.mxu0 0.0
        %428 = vmatpush.msra.mxu0 0.0
        %429 = vmatpush.msra.mxu0 0.0
        %430 = vmatpush.msra.mxu0 %v378
        %431 = vmatmul.f32.gmra.mxu0 %v356
        %v432 = vpop.f32.mrf.mxu0
        %v433 = vadd.f32 0.0, %v432
        %434 = vmatmul.f32.gmra.mxu0 %v359
        %v435 = vpop.f32.mrf.mxu0
        %v436 = vadd.f32 0.0, %v435
        %437 = vmatmul.f32.gmra.mxu0 %v362
        %v438 = vpop.f32.mrf.mxu0
        %v439 = vadd.f32 0.0, %v438
        %440 = vmatmul.f32.gmra.mxu0 %v365
        %v441 = vpop.f32.mrf.mxu0
        %v442 = vadd.f32 0.0, %v441
        %443 = vmatmul.f32.gmra.mxu0 %v368
        %v444 = vpop.f32.mrf.mxu0
        %v445 = vadd.f32 0.0, %v444
        %446 = vmatmul.f32.gmra.mxu0 %v371
        %v447 = vpop.f32.mrf.mxu0
        %v448 = vadd.f32 0.0, %v447
        %449 = vdwg.mxu0
        %v450 = vmul.f32 %v398, %v401
        %v451 = vmul.f32 %v433, %v436
        %v452 = vadd.f32 %v450, %v404
        %v453 = vadd.f32 %v451, %v439
        %v454 = vmul.f32 %v407, %v410
        %v455 = vmul.f32 %v442, %v445
        %v456 = vadd.f32 %v454, %v413
        %v457 = vadd.f32 %v455, %v448
        %v458 = vld [vmem:[%s338] sm:$0xff]
        %v459 = vld [vmem:[%s342] sm:$0xff]
        %461 = vset.pattern.permute.xlu0 0
        %462 = vperm.xlu0 %461, %v459
        %v463 = vpop.permute.xlu0 %462
        %v465 = vmul.f32 %v452, %v463
        %v466 = vmul.f32 %v453, %v463
        %468 = vset.pattern.permute.xlu0 0
        %469 = vperm.xlu0 %468, %v458
        %v470 = vpop.permute.xlu0 %469
        %v472 = vmul.f32 %v465, %v470
        %v473 = vmul.f32 %v466, %v470
        %v474 = vsub.f32 %v456, %v472
        %v475 = vsub.f32 %v457, %v473
        %v476 = vmul.f32 %v465, %v344
        %v477 = vmul.f32 %v466, %v345
        %v478 = vadd.f32 %v476, %v474
        %v479 = vadd.f32 %v477, %v475
        %480 = vst [vmem:[%s309] sm:$0xff] %v478
        %481 = vst [vmem:[%s309 + $0x8] sm:$0xff] %v479
        %s482 = sand.u32 %s175, 1
        %s483 = scalar_lea.sflag [#allocation3], %s482
        %s484 = sand.u32 %s175, 1
        %s485 = smul.addr %s484, 16
        %s486 = scalar_lea.vmem [#allocation2], %s485
        // Predicated region
        $region41: #{tpu_custom_call.1} parent=39 // pred_check
          %p487 = pneg %p185
        $region42: #{tpu_custom_call.1} parent=39 // pred_check_branch
          %489 = sbr.rel (%p487) target = $region44
        $region43: #{tpu_custom_call.1} parent=39 // pred_region
          %s490 = smul.u32 2, %s24
          %492 = vsyncadd %s483, 0
          %s493 = smul.addr %s23, 2
          %s494 = sadd.s32 %s490, %s493
          %s495 = smul.addr %s494, 8
          %s496 = scalar_lea.hbm %s5, %s495
          %s498 = sshll.u32 %s486, 4
          %s499 = int_to_ptr.vmem [resolvable:$true] %s498
          %s500 = sshll.u32 %s496, 4
          %s501 = int_to_ptr.hbm [resolvable:$true] %s500
          %503 = dma.vmem_to_hbm [thread:$0]  %s499, 256, %s501, %s483
        $region44: #{tpu_custom_call.1} parent=39 // pred_fallthru
          _
      $region40: #{tpu_custom_call.1} parent=5 // pred_fallthru
        _
      %p504 = scmp.le.s32.totalorder 2, %s14
      // Predicated region
      $region45: #{tpu_custom_call.1} parent=5 // pred_check
        %p505 = pneg %p504
      $region46: #{tpu_custom_call.1} parent=5 // pred_check_branch
        %507 = sbr.rel (%p505) target = $region48
      $region47: #{tpu_custom_call.1} parent=5 // pred_region
        %s508 = ssub.s32 %s14, 2
        // Predicated region
        $region49: #{tpu_custom_call.1} parent=47 // pred_check
          %p509 = pneg %p191
        $region50: #{tpu_custom_call.1} parent=47 // pred_check_branch
          %511 = sbr.rel (%p509) target = $region52
        $region51: #{tpu_custom_call.1} parent=47 // pred_region
          %s512 = sand.u32 %s176, 1
          %s513 = scalar_lea.sflag [#allocation3], %s512
          %s514 = sand.u32 %s176, 1
          %s515 = smul.addr %s514, 16
          %s516 = scalar_lea.vmem [#allocation2], %s515
          %518 = dma.done %s513, 256
        $region52: #{tpu_custom_call.1} parent=47 // pred_fallthru
          _
      $region48: #{tpu_custom_call.1} parent=5 // pred_fallthru
        _
    $region6: #{tpu_custom_call.1} parent=1 // loop_footer
      %s18 = sadd.s32 1, %s14
    $region7: #{tpu_custom_call.1} parent=1 // loop_footer_branch
      %13 = sbr.rel target = $region3
    $region8: #{tpu_custom_call.1} parent=1 // loop_exit
      _
    %519 = vsyncpa [#allocation3], 1
    %s520 = scalar_lea.sflag [#allocation3], 1
    %521 = vsyncpa %s520, 1

</llo_original>
